<compile_context>
chip_gen: v7x
topology: tpu7x:2x2x1
jax: 0.10.0
libtpu: 0.0.40
codegen_flags: <defaults>
</compile_context>

<pallas_src>
import functools

import jax
import jax.numpy as jnp
from jax import lax
from jax.experimental import pallas as pl
from jax.experimental.pallas import tpu as pltpu

_NEG_BIG = -1e30          # large-negative init (avoids inf-inf NaNs)
_EPS_SQ = 1e-24           # (torch F.normalize eps=1e-12)^2, clamp on squared norm


# ----------------------------------------------------------------------------- stage 1
def _normalize_kernel(x0_ref, x1_ref, emb_ref, pos_ref, *, inv_temp):
    """Row-normalize both views and emit positive logits for one batch row-tile."""
    x0 = x0_ref[...].astype(jnp.float32)                     # (T, C)
    x1 = x1_ref[...].astype(jnp.float32)                     # (T, C)

    # rsqrt on the clamped squared norm == x / max(||x||, 1e-12)  (EUP, no divide)
    inv0 = lax.rsqrt(jnp.maximum(jnp.sum(x0 * x0, axis=1, keepdims=True), _EPS_SQ))
    inv1 = lax.rsqrt(jnp.maximum(jnp.sum(x1 * x1, axis=1, keepdims=True), _EPS_SQ))
    x0n = x0 * inv0
    x1n = x1 * inv1

    # Both halves of the "concatenated" embedding slab (free reshape outside).
    emb_ref[0] = x0n.astype(emb_ref.dtype)
    emb_ref[1] = x1n.astype(emb_ref.dtype)

    # Positive logit = cos(out0_i, out1_i) / T ; identical for both halves.
    pos = jnp.sum(x0n * x1n, axis=1, keepdims=True) * inv_temp  # (T, 1), f32
    pos_ref[0] = pos
    pos_ref[1] = pos


# ----------------------------------------------------------------------------- stage 2
def _ntxent_lse_kernel(q_ref, k_ref, pos_ref, loss_ref, m_ref, l_ref,
                       *, inv_temp, tile_q, tile_k, n_k):
    """Online-LSE cross-entropy over (large / resident) key tiles for one row tile."""
    qi = pl.program_id(0)
    kj = pl.program_id(1)

    @pl.when(kj == 0)
    def _init():
        m_ref[...] = jnp.full_like(m_ref, _NEG_BIG)
        l_ref[...] = jnp.zeros_like(l_ref)

    # Fold 1/T into the small (Tq, D) operand (stays in the embedding dtype so the
    # MXU sees native bf16 operands when use_bf16_matmul=True).
    q = q_ref[...] * inv_temp

    # (Tq, Tk) similarity tile; contraction over the last (lane) dim of both operands
    # feeds the MXU directly (no transpose / relayout), accumulation in f32.
    s = lax.dot_general(
        q, k_ref[...],
        dimension_numbers=(((1,), (1,)), ((), ())),
        preferred_element_type=jnp.float32,
    )

    # Online (flash-style) log-sum-exp update over the full tile (diag included).
    m_prev = m_ref[...]
    m_new = jnp.maximum(m_prev, jnp.max(s, axis=1, keepdims=True))
    alpha = jnp.exp(m_prev - m_new)
    p = jnp.exp(s - m_new)
    l_ref[...] = l_ref[...] * alpha + jnp.sum(p, axis=1, keepdims=True)
    m_ref[...] = m_new

    # Remove the self-similarity contribution.  Because tile_k is a multiple of
    # tile_q, the diagonal entries of row-tile qi live entirely in column tile
    # (qi*tile_q)//tile_k, so all iota/compare/select work is pl.when-gated and
    # skipped on every other column step.
    @pl.when(kj == (qi * tile_q) // tile_k)
    def _drop_diag():
        off = qi * tile_q - kj * tile_k
        lr = lax.broadcasted_iota(jnp.int32, (tile_q, tile_k), 0)
        lc = lax.broadcasted_iota(jnp.int32, (tile_q, tile_k), 1)
        diag = jnp.sum(jnp.where(lc == lr + off, p, 0.0), axis=1, keepdims=True)
        l_ref[...] = l_ref[...] - diag

    @pl.when(kj == n_k - 1)
    def _finalize():
        lse = m_ref[...] + jnp.log(l_ref[...])
        loss_ref[...] = lse - pos_ref[...]       # per-row cross-entropy


# ----------------------------------------------------------------------------- tiling
def _row_tile(n):
    """Row tile: multiple of 8 dividing n (prefer 128 -> >=2 tiles for megacore)."""
    for t in (128, 256, 64, 32, 16, 8):
        if n % t == 0:
            return t
    return n   # full-extent block is always layout-legal


def _vmem_capacity_bytes():
    try:
        return int(pltpu.get_tpu_info().vmem_capacity_bytes)
    except Exception:
        return 64 * 1024 * 1024   # v7x per-TensorCore floor


def _col_tile(n, tile_q, dim, emb_itemsize, budget_bytes):
    """Largest key tile (multiple of tile_q, divisor of n) fitting the VMEM budget."""
    def need(tk):
        return (2 * tk * dim * emb_itemsize          # key blocks (double-buffered)
                + 2 * tile_q * dim * emb_itemsize    # query blocks
                + 3 * tile_q * tk * 4                # s / p / temporaries (f32)
                + 8 * tile_q * 4)                    # pos, loss, m, l

    if need(n) <= budget_bytes:
        return n                                     # fully VMEM-resident key slab
    best = tile_q
    tk = tile_q
    cap = min(n, 4096)                               # chunked fallback: 1K-4K columns
    while tk <= cap:
        if n % tk == 0 and need(tk) <= budget_bytes:
            best = tk
        tk += tile_q
    return best


# ----------------------------------------------------------------------------- wrapper
def ntxent_loss(out0, out1, temperature=0.5, use_bf16_matmul=True, col_tile=None):
    """NT-Xent loss (SimCLR), memory bank disabled. out0/out1: (batch, dim)."""
    if abs(temperature) < 1e-8:
        raise ValueError(f"Illegal temperature: abs({temperature}) < 1e-8")
    batch_size, dim = out0.shape
    assert out1.shape == (batch_size, dim)

    inv_temp = float(1.0 / temperature)
    emb_dtype = jnp.bfloat16 if use_bf16_matmul else jnp.float32
    emb_itemsize = 2 if use_bf16_matmul else 4

    # --- Stage 1: normalize + positive logits + packed (2, B, C) embedding slab.
    tile_b = _row_tile(batch_size)
    emb3, pos3 = pl.pallas_call(
        functools.partial(_normalize_kernel, inv_temp=inv_temp),
        grid=(batch_size // tile_b,),
        in_specs=[
            pl.BlockSpec((tile_b, dim), lambda i: (i, 0)),
            pl.BlockSpec((tile_b, dim), lambda i: (i, 0)),
        ],
        out_specs=[
            pl.BlockSpec((2, tile_b, dim), lambda i: (0, i, 0)),
            pl.BlockSpec((2, tile_b, 1), lambda i: (0, i, 0)),
        ],
        out_shape=[
            jax.ShapeDtypeStruct((2, batch_size, dim), emb_dtype),
            jax.ShapeDtypeStruct((2, batch_size, 1), jnp.float32),
        ],
        compiler_params=pltpu.CompilerParams(dimension_semantics=("parallel",)),
    )(out0, out1)

    n = 2 * batch_size
    emb = emb3.reshape(n, dim)     # free row-major view == cat([out0n, out1n], 0)
    pos = pos3.reshape(n, 1)

    # --- Stage 2 tiling: large / VMEM-resident key tile, sized per generation.
    tile_q = _row_tile(n)
    vmem_cap = _vmem_capacity_bytes()
    vmem_limit = min(int(vmem_cap * 0.9), 112 * 1024 * 1024)
    block_budget = int(vmem_limit * 0.8)
    if col_tile is not None:
        tile_k = int(col_tile)
    else:
        tile_k = _col_tile(n, tile_q, dim, emb_itemsize, block_budget)
    assert n % tile_k == 0 and tile_k % tile_q == 0, (n, tile_q, tile_k)
    n_q = n // tile_q
    n_k = n // tile_k

    per_row = pl.pallas_call(
        functools.partial(_ntxent_lse_kernel, inv_temp=inv_temp,
                          tile_q=tile_q, tile_k=tile_k, n_k=n_k),
        grid=(n_q, n_k),
        in_specs=[
            pl.BlockSpec((tile_q, dim), lambda qi, kj: (qi, 0)),   # query rows
            pl.BlockSpec((tile_k, dim), lambda qi, kj: (kj, 0)),   # key rows (resident
                                                                   # when tile_k == n)
            pl.BlockSpec((tile_q, 1), lambda qi, kj: (qi, 0)),     # positive logits
        ],
        out_specs=pl.BlockSpec((tile_q, 1), lambda qi, kj: (qi, 0)),
        out_shape=jax.ShapeDtypeStruct((n, 1), jnp.float32),
        scratch_shapes=[
            pltpu.VMEM((tile_q, 1), jnp.float32),   # running max
            pltpu.VMEM((tile_q, 1), jnp.float32),   # running sum
        ],
        compiler_params=pltpu.CompilerParams(
            dimension_semantics=("parallel", "arbitrary"),
            vmem_limit_bytes=int(vmem_limit)),
    )(emb, emb, pos)

    return jnp.mean(per_row)


# ----------------------------------------------------------------------------- reference
def _ntxent_loss_ref(out0, out1, temperature=0.5):
    """Pure-JAX reference mirroring the PyTorch forward (memory_bank_size=0)."""
    b = out0.shape[0]
    x0 = out0 / jnp.maximum(jnp.linalg.norm(out0, axis=1, keepdims=True), 1e-12)
    x1 = out1 / jnp.maximum(jnp.linalg.norm(out1, axis=1, keepdims=True), 1e-12)
    output = jnp.concatenate([x0, x1], axis=0)
    logits = output @ output.T / temperature
    n = 2 * b
    mask = ~jnp.eye(n, dtype=bool)
    logits = logits[mask].reshape(n, n - 1)
    labels = jnp.arange(b)
    labels = jnp.concatenate([labels + b - 1, labels])
    logp = jax.nn.log_softmax(logits, axis=1)
    return -jnp.mean(logp[jnp.arange(n), labels])


if __name__ == "__main__":
    key = jax.random.PRNGKey(0)
    k0, k1, k2, k3 = jax.random.split(key, 4)

    # Case 1: resident-K path (single column tile), exact f32 matmul, tight tolerance.
    batch, dim = 8, 128
    out0 = jax.random.normal(k0, (batch, dim), dtype=jnp.float32)
    out1 = jax.random.normal(k1, (batch, dim), dtype=jnp.float32)
    loss = jax.block_until_ready(ntxent_loss(out0, out1, 0.5, use_bf16_matmul=False))
    loss_ref = jax.block_until_ready(_ntxent_loss_ref(out0, out1, 0.5))
    assert jnp.allclose(loss, loss_ref, atol=2e-5, rtol=2e-5), (loss, loss_ref)

    # Case 2: chunked-K path (forced small column tile) to exercise the online LSE and
    # the pl.when-gated diagonal correction across multiple column tiles.
    batch2, dim2 = 24, 128
    a0 = jax.random.normal(k2, (batch2, dim2), dtype=jnp.float32)
    a1 = jax.random.normal(k3, (batch2, dim2), dtype=jnp.float32)
    loss2 = jax.block_until_ready(
        ntxent_loss(a0, a1, 0.2, use_bf16_matmul=False, col_tile=16))
    loss2_ref = jax.block_until_ready(_ntxent_loss_ref(a0, a1, 0.2))
    assert jnp.allclose(loss2, loss2_ref, atol=2e-5, rtol=2e-5), (loss2, loss2_ref)

    # Case 3: default configuration (bf16 MXU operands) — bf16-level tolerance.
    loss3 = jax.block_until_ready(ntxent_loss(a0, a1, 0.5))
    loss3_ref = jax.block_until_ready(_ntxent_loss_ref(a0, a1, 0.5))
    assert jnp.abs(loss3 - loss3_ref) < 5e-2, (loss3, loss3_ref)

    print("KERNEL_OK")
</pallas_src>

<mosaic_0001>
module attributes {stable_mosaic.version = 11 : i64} {
  func.func @_normalize_kernel(%arg0: i32, %arg1: memref<8x128xf32, #tpu.memory_space<vmem>>, %arg2: memref<8x128xf32, #tpu.memory_space<vmem>>, %arg3: memref<2x8x128xf32, #tpu.memory_space<vmem>>, %arg4: memref<2x8x1xf32, #tpu.memory_space<vmem>>) attributes {dimension_semantics = [#tpu.dimension_semantics<parallel>], iteration_bounds = array<i64: 1>, scalar_prefetch = 0 : i64, scratch_operands = 0 : i64, tpu.core_type = #tpu.core_type<tc>, window_params = [{transform_indices = @transform_0, window_bounds = array<i64: 8, 128>}, {transform_indices = @transform_1, window_bounds = array<i64: 8, 128>}, {transform_indices = @transform_2, window_bounds = array<i64: 2, 8, 128>}, {transform_indices = @transform_3, window_bounds = array<i64: 2, 8, 1>}]} {
    %c0 = arith.constant 0 : index
    %c0_0 = arith.constant 0 : index
    %0 = vector.load %arg1[%c0, %c0_0] : memref<8x128xf32, #tpu.memory_space<vmem>>, vector<8x128xf32>
    %c0_1 = arith.constant 0 : index
    %c0_2 = arith.constant 0 : index
    %1 = vector.load %arg2[%c0_1, %c0_2] : memref<8x128xf32, #tpu.memory_space<vmem>>, vector<8x128xf32>
    %2 = arith.mulf %0, %0 : vector<8x128xf32>
    %cst = arith.constant dense<0.000000e+00> : vector<8xf32>
    %3 = vector.multi_reduction <add>, %2, %cst [1] : vector<8x128xf32> to vector<8xf32>
    %4 = vector.shape_cast %3 : vector<8xf32> to vector<8x1xf32>
    %cst_3 = arith.constant 1.000000e-24 : f32
    %5 = vector.broadcast %cst_3 : f32 to vector<8x1xf32>
    %6 = arith.maximumf %4, %5 : vector<8x1xf32>
    %7 = math.rsqrt %6 : vector<8x1xf32>
    %8 = arith.mulf %1, %1 : vector<8x128xf32>
    %cst_4 = arith.constant dense<0.000000e+00> : vector<8xf32>
    %9 = vector.multi_reduction <add>, %8, %cst_4 [1] : vector<8x128xf32> to vector<8xf32>
    %10 = vector.shape_cast %9 : vector<8xf32> to vector<8x1xf32>
    %cst_5 = arith.constant 1.000000e-24 : f32
    %11 = vector.broadcast %cst_5 : f32 to vector<8x1xf32>
    %12 = arith.maximumf %10, %11 : vector<8x1xf32>
    %13 = math.rsqrt %12 : vector<8x1xf32>
    %14 = vector.broadcast %7 : vector<8x1xf32> to vector<8x128xf32>
    %15 = arith.mulf %0, %14 : vector<8x128xf32>
    %16 = vector.broadcast %13 : vector<8x1xf32> to vector<8x128xf32>
    %17 = arith.mulf %1, %16 : vector<8x128xf32>
    %c0_6 = arith.constant 0 : index
    %c0_7 = arith.constant 0 : index
    %c0_8 = arith.constant 0 : index
    %18 = vector.load %arg3[%c0_6, %c0_7, %c0_8] : memref<2x8x128xf32, #tpu.memory_space<vmem>>, vector<1x8x128xf32>
    %19 = vector.shape_cast %18 : vector<1x8x128xf32> to vector<8x128xf32>
    %20 = vector.shape_cast %15 : vector<8x128xf32> to vector<1x8x128xf32>
    tpu.vector_store %arg3[%c0_6, %c0_7, %c0_8], %20 {strides = array<i32>} : memref<2x8x128xf32, #tpu.memory_space<vmem>>, vector<1x8x128xf32>,
    %c1 = arith.constant 1 : index
    %c0_9 = arith.constant 0 : index
    %c0_10 = arith.constant 0 : index
    %21 = vector.load %arg3[%c1, %c0_9, %c0_10] : memref<2x8x128xf32, #tpu.memory_space<vmem>>, vector<1x8x128xf32>
    %22 = vector.shape_cast %21 : vector<1x8x128xf32> to vector<8x128xf32>
    %23 = vector.shape_cast %17 : vector<8x128xf32> to vector<1x8x128xf32>
    tpu.vector_store %arg3[%c1, %c0_9, %c0_10], %23 {strides = array<i32>} : memref<2x8x128xf32, #tpu.memory_space<vmem>>, vector<1x8x128xf32>,
    %24 = arith.mulf %15, %17 : vector<8x128xf32>
    %cst_11 = arith.constant dense<0.000000e+00> : vector<8xf32>
    %25 = vector.multi_reduction <add>, %24, %cst_11 [1] : vector<8x128xf32> to vector<8xf32>
    %26 = vector.shape_cast %25 : vector<8xf32> to vector<8x1xf32>
    %cst_12 = arith.constant 2.000000e+00 : f32
    %27 = vector.broadcast %cst_12 : f32 to vector<8x1xf32>
    %28 = arith.mulf %26, %27 : vector<8x1xf32>
    %c0_13 = arith.constant 0 : index
    %c0_14 = arith.constant 0 : index
    %c0_15 = arith.constant 0 : index
    %29 = vector.load %arg4[%c0_13, %c0_14, %c0_15] : memref<2x8x1xf32, #tpu.memory_space<vmem>>, vector<1x8x1xf32>
    %30 = vector.shape_cast %29 : vector<1x8x1xf32> to vector<8x1xf32>
    %31 = vector.shape_cast %28 : vector<8x1xf32> to vector<1x8x1xf32>
    tpu.vector_store %arg4[%c0_13, %c0_14, %c0_15], %31 {strides = array<i32>} : memref<2x8x1xf32, #tpu.memory_space<vmem>>, vector<1x8x1xf32>,
    %c1_16 = arith.constant 1 : index
    %c0_17 = arith.constant 0 : index
    %c0_18 = arith.constant 0 : index
    %32 = vector.load %arg4[%c1_16, %c0_17, %c0_18] : memref<2x8x1xf32, #tpu.memory_space<vmem>>, vector<1x8x1xf32>
    %33 = vector.shape_cast %32 : vector<1x8x1xf32> to vector<8x1xf32>
    %34 = vector.shape_cast %28 : vector<8x1xf32> to vector<1x8x1xf32>
    tpu.vector_store %arg4[%c1_16, %c0_17, %c0_18], %34 {strides = array<i32>} : memref<2x8x1xf32, #tpu.memory_space<vmem>>, vector<1x8x1xf32>,
    return
  }
  func.func @transform_0(%arg0: i32) -> (i32, i32) {
    %c0_i32 = arith.constant 0 : i32
    %c0_i32_0 = arith.constant 0 : i32
    return %arg0, %c0_i32 : i32, i32
  }
  func.func @transform_1(%arg0: i32) -> (i32, i32) {
    %c0_i32 = arith.constant 0 : i32
    %c0_i32_0 = arith.constant 0 : i32
    return %arg0, %c0_i32 : i32, i32
  }
  func.func @transform_2(%arg0: i32) -> (i32, i32, i32) {
    %c0_i32 = arith.constant 0 : i32
    %c0_i32_0 = arith.constant 0 : i32
    %c0_i32_1 = arith.constant 0 : i32
    return %c0_i32, %arg0, %c0_i32_0 : i32, i32, i32
  }
  func.func @transform_3(%arg0: i32) -> (i32, i32, i32) {
    %c0_i32 = arith.constant 0 : i32
    %c0_i32_0 = arith.constant 0 : i32
    %c0_i32_1 = arith.constant 0 : i32
    return %c0_i32, %arg0, %c0_i32_0 : i32, i32, i32
  }
}

</mosaic_0001>

<llo_original>
// kernel: tpu_custom_call.1
$region0: #{tpu_custom_call.1}
  #allocation0 [shape = 'u32[]', space=smem, size = 0x4, offset = 0x4, fixed_abs, tag = 'smem constant byte address 0x4 - core index']
  #allocation1 [shape = 'u32[144,128]{1,0:T(1,128)}', space=vmem, size = 0x12000, scoped, tag = 'internal scratch']
  %s0 = inlined_call_operand.hbm [shape: f32[8,128], index: 0, kind: input, shape index: {}]
  %s1 = inlined_call_operand.hbm [shape: f32[8,128], index: 1, kind: input, shape index: {}]
  %s2 = inlined_call_operand.hbm [shape: f32[2,8,128], index: 2, kind: output, shape index: {0}]
  %s3 = inlined_call_operand.vmem [shape: f32[2,8,1], index: 3, kind: output, shape index: {1}]
  %4 = xla_tuple %s2, %s3
  %s5 = sld [smem:[#allocation0]]
  $region34: #{tpu_custom_call.1} parent=0
    _
  %s7 = ssub.s32 1, %s5
  %s8 = scalar_select 0, %s7, %s5
  $region1: #{tpu_custom_call.1} parent=0
    #allocation2 [shape = 'u8[4096]{0}', space=vmem, size = 0x1000, scoped, tag = 'input window, operand 0, single buffered']
    #allocation3 [shape = 's32[1]{0}', space=sflag, size = 0x4, scoped, tag = 'scoped memory for tpu_custom_call.1']
    #allocation4 [shape = 's32[1]{0}', space=sflag, size = 0x4, scoped, tag = 'scoped memory for tpu_custom_call.1']
    #allocation5 [shape = 'u8[4096]{0}', space=vmem, size = 0x1000, scoped, tag = 'input window, operand 1, single buffered']
    #allocation6 [shape = 's32[1]{0}', space=sflag, size = 0x4, scoped, tag = 'scoped memory for tpu_custom_call.1']
    #allocation7 [shape = 'u8[8192]{0}', space=vmem, size = 0x2000, scoped, tag = 'output window, operand 0, single buffered']
    %9 = vsyncpa [#allocation3], 0
    %10 = vsyncpa [#allocation6], 0
    %11 = vsyncpa [#allocation4], 0
    // Predicated region
    $region2: #{tpu_custom_call.1} parent=1 // pred_check
      _
    $region3: #{tpu_custom_call.1} parent=1 // pred_check_branch
      %13 = sbr.rel (0) target = $region5
    $region4: #{tpu_custom_call.1} parent=1 // pred_region
      %s15 = ssub.s32 128, 128
      %16 = vsyncadd [#allocation3], %s15
      %s18 = sshll.u32 [#allocation2], 4
      %s19 = int_to_ptr.vmem [resolvable:$true] %s18
      %21 = dma.hbm_to_vmem [thread:$0]  %s0, 128, %s19, [#allocation3]
    $region5: #{tpu_custom_call.1} parent=1 // pred_fallthru
      _
    // Predicated region
    $region6: #{tpu_custom_call.1} parent=1 // pred_check
      _
    $region7: #{tpu_custom_call.1} parent=1 // pred_check_branch
      %23 = sbr.rel (0) target = $region9
    $region8: #{tpu_custom_call.1} parent=1 // pred_region
      %s25 = ssub.s32 128, 128
      %26 = vsyncadd [#allocation6], %s25
      %s28 = sshll.u32 [#allocation5], 4
      %s29 = int_to_ptr.vmem [resolvable:$true] %s28
      %31 = dma.hbm_to_vmem [thread:$0]  %s1, 128, %s29, [#allocation6]
    $region9: #{tpu_custom_call.1} parent=1 // pred_fallthru
      _
    // Predicated region
    $region10: #{tpu_custom_call.1} parent=1 // pred_check
      _
    $region11: #{tpu_custom_call.1} parent=1 // pred_check_branch
      %33 = sbr.rel (0) target = $region13
    $region12: #{tpu_custom_call.1} parent=1 // pred_region
      %34 = dma.done [#allocation3], 128
    $region13: #{tpu_custom_call.1} parent=1 // pred_fallthru
      _
    // Predicated region
    $region14: #{tpu_custom_call.1} parent=1 // pred_check
      _
    $region15: #{tpu_custom_call.1} parent=1 // pred_check_branch
      %36 = sbr.rel (0) target = $region17
    $region16: #{tpu_custom_call.1} parent=1 // pred_region
      %37 = dma.done [#allocation6], 128
    $region17: #{tpu_custom_call.1} parent=1 // pred_fallthru
      _
    %v38 = vld [vmem:[#allocation2] sm:$0xff]
    %v39 = vld [vmem:[#allocation5] sm:$0xff]
    %v40 = vmul.f32 %v38, %v38
    %41 = vadd.xlane.f32.xlu0 %v40
    %v42 = vpop.xlane.xlu0 %41
    %v43 = vmax.f32 %v42, 1e-24
    %v44 = vrsqrt.pop %v43
    %v45 = vmul.f32 %v39, %v39
    %46 = vadd.xlane.f32.xlu0 %v45
    %v47 = vpop.xlane.xlu0 %46
    %v48 = vmax.f32 %v47, 1e-24
    %v49 = vrsqrt.pop %v48
    %v50 = vmul.f32 %v38, %v44
    %v51 = vmul.f32 %v39, %v49
    %52 = vst [vmem:[#allocation7] sm:$0xff] %v50
    %s53 = scalar_lea.vmem [#allocation7], 8
    %54 = vst [vmem:[%s53] sm:$0xff] %v51
    %v55 = vmul.f32 %v50, %v51
    %56 = vadd.xlane.f32.xlu0 %v55
    %v57 = vpop.xlane.xlu0 %56
    %v58 = vmul.f32 %v57, 2.0
    %vm59 = vcmask 7168
    %60 = vst.msk [vmem:[%s3] sm:$0xff] %vm59, %v58
    %s61 = scalar_lea.vmem %s3, 8
    %62 = vst.msk [vmem:[%s61] sm:$0xff] %vm59, %v58
    // Predicated region
    $region18: #{tpu_custom_call.1} parent=1 // pred_check
      _
    $region19: #{tpu_custom_call.1} parent=1 // pred_check_branch
      %64 = sbr.rel (0) target = $region21
    $region20: #{tpu_custom_call.1} parent=1 // pred_region
      %s66 = ssub.s32 256, 256
      %67 = vsyncadd [#allocation4], %s66
      %s68 = sshll.u32 [#allocation7], 4
      %s69 = int_to_ptr.vmem [resolvable:$true] %s68
      %74 = dma.vmem_to_hbm [thread:$0]  %s69, 256, %s2, [#allocation4], 128, 128, 8
    $region21: #{tpu_custom_call.1} parent=1 // pred_fallthru
      _
    // Predicated region
    $region22: #{tpu_custom_call.1} parent=1 // pred_check
      _
    $region23: #{tpu_custom_call.1} parent=1 // pred_check_branch
      %76 = sbr.rel (0) target = $region25
    $region24: #{tpu_custom_call.1} parent=1 // pred_region
      _
    $region25: #{tpu_custom_call.1} parent=1 // pred_fallthru
      _
    // Predicated region
    $region26: #{tpu_custom_call.1} parent=1 // pred_check
      _
    $region27: #{tpu_custom_call.1} parent=1 // pred_check_branch
      %78 = sbr.rel (0) target = $region29
    $region28: #{tpu_custom_call.1} parent=1 // pred_region
      %79 = dma.done [#allocation4], 256
    $region29: #{tpu_custom_call.1} parent=1 // pred_fallthru
      _
    // Predicated region
    $region30: #{tpu_custom_call.1} parent=1 // pred_check
      _
    $region31: #{tpu_custom_call.1} parent=1 // pred_check_branch
      %81 = sbr.rel (0) target = $region33
    $region32: #{tpu_custom_call.1} parent=1 // pred_region
      _
    $region33: #{tpu_custom_call.1} parent=1 // pred_fallthru
      _
    %82 = vsyncpa [#allocation3], 1
    %83 = vsyncpa [#allocation6], 1
    %84 = vsyncpa [#allocation4], 1

</llo_original>
